<compile_context>
chip_gen: v6e
topology: v6e:2x2x1
jax: 0.10.0
libtpu: 0.0.40
codegen_flags: <defaults>
</compile_context>

<pallas_src>
import functools

import jax
import jax.numpy as jnp
from jax import lax
from jax.experimental import pallas as pl
from jax.experimental.pallas import tpu as pltpu


LOG_STD_MIN = -20.0
LOG_STD_MAX = 2.0


def _round_up(x, m):
    return (x + m - 1) // m * m


def _cdiv(a, b):
    return -(-a // b)


def policy_kernel(x_ref, w1_ref, b1_ref, w2_ref, b2_ref, wh_ref, bh_ref,
                  out_ref, *, op_padded):
    # Layer 1: bf16 MXU inputs, f32 accumulate; bias add / ReLU in f32.
    x = x_ref[...].astype(jnp.bfloat16)
    h1 = jnp.dot(x, w1_ref[...], preferred_element_type=jnp.float32) + b1_ref[...]
    h1 = jnp.maximum(h1, 0.0)

    # Layer 2.
    h2 = jnp.dot(h1.astype(jnp.bfloat16), w2_ref[...],
                 preferred_element_type=jnp.float32) + b2_ref[...]
    h2 = jnp.maximum(h2, 0.0)

    # Fused mean/log_std heads: one [H, 2*Op] matmul.
    heads = jnp.dot(h2.astype(jnp.bfloat16), wh_ref[...],
                    preferred_element_type=jnp.float32) + bh_ref[...]

    # Clamp only the log_std half (upper Op lanes) via a lane-index mask,
    # then store a single lane-dense bf16 block (split + upcast outside).
    col = lax.broadcasted_iota(jnp.int32, heads.shape, 1)
    clipped = jnp.clip(heads, LOG_STD_MIN, LOG_STD_MAX)
    out = jnp.where(col >= op_padded, clipped, heads)
    out_ref[...] = out.astype(out_ref.dtype)


def prepare_policy_params(params, *, input_dim, output_dim, hidden_dim):
    """One-time layout prep: pad to TPU tiles, fuse the two heads, cast the
    MXU weights to bf16. Done once at init, NOT per forward call."""
    Hp = _round_up(hidden_dim, 128)
    Op = _round_up(output_dim, 128)

    def pad2(a, r, c):
        return jnp.pad(a, ((0, r - a.shape[0]), (0, c - a.shape[1])))

    w1 = pad2(params["w1"], input_dim, Hp).astype(jnp.bfloat16)      # [Din, Hp]
    b1 = pad2(params["b1"].reshape(1, -1), 1, Hp).astype(jnp.float32)
    w2 = pad2(params["w2"], Hp, Hp).astype(jnp.bfloat16)             # [Hp, Hp]
    b2 = pad2(params["b2"].reshape(1, -1), 1, Hp).astype(jnp.float32)

    wm = pad2(params["wm"], Hp, Op)
    ws = pad2(params["ws"], Hp, Op)
    wh = jnp.concatenate([wm, ws], axis=1).astype(jnp.bfloat16)      # [Hp, 2*Op]
    bm = pad2(params["bm"].reshape(1, -1), 1, Op)
    bs = pad2(params["bs"].reshape(1, -1), 1, Op)
    bh = jnp.concatenate([bm, bs], axis=1).astype(jnp.float32)       # [1, 2*Op]

    return dict(w1=w1, b1=b1, w2=w2, b2=b2, wh=wh, bh=bh)


def _choose_batch_tiling(B):
    """Pick (TB, n_tiles) with TB a multiple of 8, minimal padding, and at
    least 2 (even) grid steps for B > 16 so v7x's two TCs both get work."""
    TB_MAX = 1024
    if B <= 16:
        TB = _round_up(max(B, 8), 8)
        return TB, 1
    n_tiles = max(2, _cdiv(B, TB_MAX))
    n_tiles = 2 * _cdiv(n_tiles, 2)              # even number of grid steps
    TB = _round_up(_cdiv(B, n_tiles), 8)
    return TB, n_tiles


@functools.partial(jax.jit, static_argnames=("input_dim", "output_dim", "hidden_dim"))
def policy_forward(state, prepped, *, input_dim, output_dim, hidden_dim):
    """state: [B, input_dim] f32; prepped: output of prepare_policy_params.
    Returns (mean [B, output_dim], log_std [B, output_dim]) in float32."""
    B = state.shape[0]
    Hp = _round_up(hidden_dim, 128)
    Op = _round_up(output_dim, 128)
    Din = input_dim

    TB, n_tiles = _choose_batch_tiling(B)
    Bp = TB * n_tiles

    x_p = state.astype(jnp.float32)
    if Bp != B:
        x_p = jnp.pad(x_p, ((0, Bp - B), (0, 0)))

    kernel = functools.partial(policy_kernel, op_padded=Op)

    resident = lambda shape: pl.BlockSpec(shape, lambda i: (0, 0))   # weights stay in VMEM

    out_p = pl.pallas_call(
        kernel,
        out_shape=jax.ShapeDtypeStruct((Bp, 2 * Op), jnp.bfloat16),
        grid=(n_tiles,),
        in_specs=[
            pl.BlockSpec((TB, Din), lambda i: (i, 0)),   # activations, tiled over batch
            resident((Din, Hp)),                         # W1 (bf16, full-array K)
            resident((1, Hp)),                           # b1
            resident((Hp, Hp)),                          # W2 (bf16)
            resident((1, Hp)),                           # b2
            resident((Hp, 2 * Op)),                      # fused head weight (bf16)
            resident((1, 2 * Op)),                       # fused head bias
        ],
        out_specs=pl.BlockSpec((TB, 2 * Op), lambda i: (i, 0)),
        compiler_params=pltpu.CompilerParams(
            dimension_semantics=("parallel",),
        ),
    )(x_p, prepped["w1"], prepped["b1"], prepped["w2"], prepped["b2"],
      prepped["wh"], prepped["bh"])

    # Split the fused output, drop batch/lane padding, upcast in the consumer.
    mean = out_p[:B, :output_dim].astype(jnp.float32)
    log_std = out_p[:B, Op:Op + output_dim].astype(jnp.float32)
    return mean, log_std


def init_policy_params(key, input_dim, output_dim, hidden_dim=256,
                       init_weight_range=0.003):
    """Parameter init mirroring the PyTorch module. Weights stored [in, out]."""
    ks = jax.random.split(key, 8)

    def linear_default(kw, kb, fan_in, fan_out):
        bound = 1.0 / jnp.sqrt(float(fan_in))
        w = jax.random.uniform(kw, (fan_in, fan_out), jnp.float32, -bound, bound)
        b = jax.random.uniform(kb, (fan_out,), jnp.float32, -bound, bound)
        return w, b

    def linear_small(kw, kb, fan_in, fan_out):
        r = init_weight_range
        w = jax.random.uniform(kw, (fan_in, fan_out), jnp.float32, -r, r)
        b = jax.random.uniform(kb, (fan_out,), jnp.float32, -r, r)
        return w, b

    w1, b1 = linear_default(ks[0], ks[1], input_dim, hidden_dim)
    w2, b2 = linear_default(ks[2], ks[3], hidden_dim, hidden_dim)
    wm, bm = linear_small(ks[4], ks[5], hidden_dim, output_dim)
    ws, bs = linear_small(ks[6], ks[7], hidden_dim, output_dim)

    return dict(w1=w1, b1=b1, w2=w2, b2=b2, wm=wm, bm=bm, ws=ws, bs=bs)


def _reference_forward(state, params):
    h1 = jnp.maximum(state @ params["w1"] + params["b1"], 0.0)
    h2 = jnp.maximum(h1 @ params["w2"] + params["b2"], 0.0)
    mean = h2 @ params["wm"] + params["bm"]
    log_std = jnp.clip(h2 @ params["ws"] + params["bs"], LOG_STD_MIN, LOG_STD_MAX)
    return mean, log_std


if __name__ == "__main__":
    # LunarLanderContinuous-style dims: state=8, action=2, hidden=256.
    INPUT_DIM, OUTPUT_DIM, HIDDEN_DIM = 8, 2, 256

    key = jax.random.PRNGKey(0)
    k_params, k_state_small, k_state_big = jax.random.split(key, 3)

    params = init_policy_params(k_params, INPUT_DIM, OUTPUT_DIM, HIDDEN_DIM)
    prepped = prepare_policy_params(
        params, input_dim=INPUT_DIM, output_dim=OUTPUT_DIM, hidden_dim=HIDDEN_DIM)

    # bf16 matmuls + bf16 output => loosened tolerance vs f32 reference
    # (fine for an RL policy's action selection).
    TOL = dict(atol=2e-2, rtol=2e-2)

    # Small batch (single grid step, single tile of 8 rows).
    state = jax.random.normal(k_state_small, (2, INPUT_DIM), jnp.float32)
    mean, log_std = policy_forward(
        state, prepped,
        input_dim=INPUT_DIM, output_dim=OUTPUT_DIM, hidden_dim=HIDDEN_DIM)
    jax.block_until_ready((mean, log_std))
    mean_ref, log_std_ref = _reference_forward(state, params)
    assert mean.shape == (2, OUTPUT_DIM) and log_std.shape == (2, OUTPUT_DIM)
    assert jnp.allclose(mean, mean_ref, **TOL)
    assert jnp.allclose(log_std, log_std_ref, **TOL)

    # Larger batch: exercises the adaptive batch grid (2 tiles of 152 -> Bp=304,
    # only 4 padded rows) and the fused mean/log_std output split.
    state_b = jax.random.normal(k_state_big, (300, INPUT_DIM), jnp.float32)
    mean_b, log_std_b = policy_forward(
        state_b, prepped,
        input_dim=INPUT_DIM, output_dim=OUTPUT_DIM, hidden_dim=HIDDEN_DIM)
    jax.block_until_ready((mean_b, log_std_b))
    mean_bref, log_std_bref = _reference_forward(state_b, params)
    assert mean_b.shape == (300, OUTPUT_DIM) and log_std_b.shape == (300, OUTPUT_DIM)
    assert jnp.allclose(mean_b, mean_bref, **TOL)
    assert jnp.allclose(log_std_b, log_std_bref, **TOL)

    print("KERNEL_OK")
</pallas_src>

<mosaic_0001>
module attributes {stable_mosaic.version = 11 : i64} {
  func.func @policy_kernel(%arg0: i32, %arg1: memref<8x8xf32, #tpu.memory_space<vmem>>, %arg2: memref<8x256xbf16, #tpu.memory_space<vmem>>, %arg3: memref<1x256xf32, #tpu.memory_space<vmem>>, %arg4: memref<256x256xbf16, #tpu.memory_space<vmem>>, %arg5: memref<1x256xf32, #tpu.memory_space<vmem>>, %arg6: memref<256x256xbf16, #tpu.memory_space<vmem>>, %arg7: memref<1x256xf32, #tpu.memory_space<vmem>>, %arg8: memref<8x256xbf16, #tpu.memory_space<vmem>>) attributes {dimension_semantics = [#tpu.dimension_semantics<parallel>], iteration_bounds = array<i64: 1>, scalar_prefetch = 0 : i64, scratch_operands = 0 : i64, tpu.core_type = #tpu.core_type<tc>, window_params = [{transform_indices = @transform_0, window_bounds = array<i64: 8, 8>}, {pipeline_mode = #tpu.pipeline_mode<synchronous>, transform_indices = @transform_1, window_bounds = array<i64: 8, 256>}, {pipeline_mode = #tpu.pipeline_mode<synchronous>, transform_indices = @transform_2, window_bounds = array<i64: 1, 256>}, {pipeline_mode = #tpu.pipeline_mode<synchronous>, transform_indices = @transform_3, window_bounds = array<i64: 256, 256>}, {pipeline_mode = #tpu.pipeline_mode<synchronous>, transform_indices = @transform_4, window_bounds = array<i64: 1, 256>}, {pipeline_mode = #tpu.pipeline_mode<synchronous>, transform_indices = @transform_5, window_bounds = array<i64: 256, 256>}, {pipeline_mode = #tpu.pipeline_mode<synchronous>, transform_indices = @transform_6, window_bounds = array<i64: 1, 256>}, {transform_indices = @transform_7, window_bounds = array<i64: 8, 256>}]} {
    %c0 = arith.constant 0 : index
    %c0_0 = arith.constant 0 : index
    %0 = vector.load %arg1[%c0, %c0_0] : memref<8x8xf32, #tpu.memory_space<vmem>>, vector<8x8xf32>
    %1 = arith.truncf %0 : vector<8x8xf32> to vector<8x8xbf16>
    %c0_1 = arith.constant 0 : index
    %c0_2 = arith.constant 0 : index
    %2 = vector.load %arg2[%c0_1, %c0_2] : memref<8x256xbf16, #tpu.memory_space<vmem>>, vector<8x256xbf16>
    %cst = arith.constant dense<0.000000e+00> : vector<8x256xf32>
    %3 = tpu.matmul %1, %2, %cst {dimension_numbers = #tpu.dot_dimension_numbers<[1], [0], [0], [1], [0, 0, 1, 1], [], []>} : vector<8x8xbf16>, vector<8x256xbf16>, vector<8x256xf32> -> vector<8x256xf32>
    %c0_3 = arith.constant 0 : index
    %c0_4 = arith.constant 0 : index
    %4 = vector.load %arg3[%c0_3, %c0_4] : memref<1x256xf32, #tpu.memory_space<vmem>>, vector<1x256xf32>
    %5 = vector.broadcast %4 : vector<1x256xf32> to vector<8x256xf32>
    %6 = arith.addf %3, %5 : vector<8x256xf32>
    %cst_5 = arith.constant 0.000000e+00 : f32
    %7 = vector.broadcast %cst_5 : f32 to vector<8x256xf32>
    %8 = arith.maximumf %6, %7 : vector<8x256xf32>
    %9 = arith.truncf %8 : vector<8x256xf32> to vector<8x256xbf16>
    %c0_6 = arith.constant 0 : index
    %c0_7 = arith.constant 0 : index
    %10 = vector.load %arg4[%c0_6, %c0_7] : memref<256x256xbf16, #tpu.memory_space<vmem>>, vector<256x256xbf16>
    %cst_8 = arith.constant dense<0.000000e+00> : vector<8x256xf32>
    %11 = tpu.matmul %9, %10, %cst_8 {dimension_numbers = #tpu.dot_dimension_numbers<[1], [0], [0], [1], [0, 0, 1, 1], [], []>} : vector<8x256xbf16>, vector<256x256xbf16>, vector<8x256xf32> -> vector<8x256xf32>
    %c0_9 = arith.constant 0 : index
    %c0_10 = arith.constant 0 : index
    %12 = vector.load %arg5[%c0_9, %c0_10] : memref<1x256xf32, #tpu.memory_space<vmem>>, vector<1x256xf32>
    %13 = vector.broadcast %12 : vector<1x256xf32> to vector<8x256xf32>
    %14 = arith.addf %11, %13 : vector<8x256xf32>
    %cst_11 = arith.constant 0.000000e+00 : f32
    %15 = vector.broadcast %cst_11 : f32 to vector<8x256xf32>
    %16 = arith.maximumf %14, %15 : vector<8x256xf32>
    %17 = arith.truncf %16 : vector<8x256xf32> to vector<8x256xbf16>
    %c0_12 = arith.constant 0 : index
    %c0_13 = arith.constant 0 : index
    %18 = vector.load %arg6[%c0_12, %c0_13] : memref<256x256xbf16, #tpu.memory_space<vmem>>, vector<256x256xbf16>
    %cst_14 = arith.constant dense<0.000000e+00> : vector<8x256xf32>
    %19 = tpu.matmul %17, %18, %cst_14 {dimension_numbers = #tpu.dot_dimension_numbers<[1], [0], [0], [1], [0, 0, 1, 1], [], []>} : vector<8x256xbf16>, vector<256x256xbf16>, vector<8x256xf32> -> vector<8x256xf32>
    %c0_15 = arith.constant 0 : index
    %c0_16 = arith.constant 0 : index
    %20 = vector.load %arg7[%c0_15, %c0_16] : memref<1x256xf32, #tpu.memory_space<vmem>>, vector<1x256xf32>
    %21 = vector.broadcast %20 : vector<1x256xf32> to vector<8x256xf32>
    %22 = arith.addf %19, %21 : vector<8x256xf32>
    %23 = tpu.iota {dimensions = array<i32: 1>} : vector<8x256xi32>
    %cst_17 = arith.constant -2.000000e+01 : f32
    %cst_18 = arith.constant 2.000000e+00 : f32
    %24 = vector.broadcast %cst_17 : f32 to vector<8x256xf32>
    %25 = arith.maximumf %24, %22 : vector<8x256xf32>
    %26 = vector.broadcast %cst_18 : f32 to vector<8x256xf32>
    %27 = arith.minimumf %26, %25 : vector<8x256xf32>
    %c128_i32 = arith.constant 128 : i32
    %28 = vector.broadcast %c128_i32 : i32 to vector<8x256xi32>
    %29 = arith.cmpi sge, %23, %28 : vector<8x256xi32>
    %30 = arith.select %29, %27, %22 : vector<8x256xi1>, vector<8x256xf32>
    %31 = arith.truncf %30 : vector<8x256xf32> to vector<8x256xbf16>
    %c0_19 = arith.constant 0 : index
    %c0_20 = arith.constant 0 : index
    %32 = vector.load %arg8[%c0_19, %c0_20] : memref<8x256xbf16, #tpu.memory_space<vmem>>, vector<8x256xbf16>
    tpu.vector_store %arg8[%c0_19, %c0_20], %31 {strides = array<i32>} : memref<8x256xbf16, #tpu.memory_space<vmem>>, vector<8x256xbf16>,
    return
  }
  func.func @transform_0(%arg0: i32) -> (i32, i32) {
    %c0_i32 = arith.constant 0 : i32
    %c0_i32_0 = arith.constant 0 : i32
    return %arg0, %c0_i32 : i32, i32
  }
  func.func @transform_1(%arg0: i32) -> (i32, i32) {
    %c0_i32 = arith.constant 0 : i32
    %c0_i32_0 = arith.constant 0 : i32
    %c0_i32_1 = arith.constant 0 : i32
    return %c0_i32, %c0_i32_0 : i32, i32
  }
  func.func @transform_2(%arg0: i32) -> (i32, i32) {
    %c0_i32 = arith.constant 0 : i32
    %c0_i32_0 = arith.constant 0 : i32
    %c0_i32_1 = arith.constant 0 : i32
    return %c0_i32, %c0_i32_0 : i32, i32
  }
  func.func @transform_3(%arg0: i32) -> (i32, i32) {
    %c0_i32 = arith.constant 0 : i32
    %c0_i32_0 = arith.constant 0 : i32
    %c0_i32_1 = arith.constant 0 : i32
    return %c0_i32, %c0_i32_0 : i32, i32
  }
  func.func @transform_4(%arg0: i32) -> (i32, i32) {
    %c0_i32 = arith.constant 0 : i32
    %c0_i32_0 = arith.constant 0 : i32
    %c0_i32_1 = arith.constant 0 : i32
    return %c0_i32, %c0_i32_0 : i32, i32
  }
  func.func @transform_5(%arg0: i32) -> (i32, i32) {
    %c0_i32 = arith.constant 0 : i32
    %c0_i32_0 = arith.constant 0 : i32
    %c0_i32_1 = arith.constant 0 : i32
    return %c0_i32, %c0_i32_0 : i32, i32
  }
  func.func @transform_6(%arg0: i32) -> (i32, i32) {
    %c0_i32 = arith.constant 0 : i32
    %c0_i32_0 = arith.constant 0 : i32
    %c0_i32_1 = arith.constant 0 : i32
    return %c0_i32, %c0_i32_0 : i32, i32
  }
  func.func @transform_7(%arg0: i32) -> (i32, i32) {
    %c0_i32 = arith.constant 0 : i32
    %c0_i32_0 = arith.constant 0 : i32
    return %arg0, %c0_i32 : i32, i32
  }
}

</mosaic_0001>

<llo_original>
// kernel: policy_forward.1
$region0: #{policy_forward.1}
  #allocation0 [shape = 'u32[]', space=smem, size = 0x4, offset = 0x4, fixed_abs, tag = 'smem constant byte address 0x4 - core index']
  #allocation1 [shape = 'u32[144,128]{1,0:T(1,128)}', space=vmem, size = 0x12000, scoped, tag = 'internal scratch']
  %s0 = inlined_call_operand.vmem [shape: f32[8,8], index: 0, kind: input, shape index: {}]
  %s1 = inlined_call_operand.vmem [shape: bf16[8,256], index: 1, kind: input, shape index: {}]
  %s2 = inlined_call_operand.vmem [shape: f32[1,256], index: 2, kind: input, shape index: {}]
  %s3 = inlined_call_operand.hbm [shape: bf16[256,256], index: 3, kind: input, shape index: {}]
  %s4 = inlined_call_operand.vmem [shape: f32[1,256], index: 4, kind: input, shape index: {}]
  %s5 = inlined_call_operand.hbm [shape: bf16[256,256], index: 5, kind: input, shape index: {}]
  %s6 = inlined_call_operand.vmem [shape: f32[1,256], index: 6, kind: input, shape index: {}]
  %s7 = inlined_call_operand.vmem [shape: bf16[8,256], index: 7, kind: output, shape index: {}]
  %s8 = sld [smem:[#allocation0]]
  $region46: #{policy_forward.1} parent=0
    _
  %s10 = ssub.s32 1, %s8
  %s11 = scalar_select 0, %s10, %s8
  $region1: #{policy_forward.1} parent=0
    #allocation2 [shape = 'u8[131072]{0}', space=vmem, size = 0x20000, scoped, tag = 'input window, operand 3, single buffered']
    #allocation3 [shape = 's32[1]{0}', space=sflag, size = 0x4, scoped, tag = 'scoped memory for policy_forward.1']
    #allocation4 [shape = 'u8[131072]{0}', space=vmem, size = 0x20000, scoped, tag = 'input window, operand 5, single buffered']
    #allocation5 [shape = 's32[1]{0}', space=sflag, size = 0x4, scoped, tag = 'scoped memory for policy_forward.1']
    %12 = vsyncpa [#allocation3], 0
    %13 = vsyncpa [#allocation5], 0
    // Predicated region
    $region2: #{policy_forward.1} parent=1 // pred_check
      _
    $region3: #{policy_forward.1} parent=1 // pred_check_branch
      %15 = sbr.rel (0) target = $region5
    $region4: #{policy_forward.1} parent=1 // pred_region
      _
    $region5: #{policy_forward.1} parent=1 // pred_fallthru
      _
    // Predicated region
    $region6: #{policy_forward.1} parent=1 // pred_check
      _
    $region7: #{policy_forward.1} parent=1 // pred_check_branch
      %17 = sbr.rel (0) target = $region9
    $region8: #{policy_forward.1} parent=1 // pred_region
      _
    $region9: #{policy_forward.1} parent=1 // pred_fallthru
      _
    // Predicated region
    $region10: #{policy_forward.1} parent=1 // pred_check
      _
    $region11: #{policy_forward.1} parent=1 // pred_check_branch
      %19 = sbr.rel (0) target = $region13
    $region12: #{policy_forward.1} parent=1 // pred_region
      _
    $region13: #{policy_forward.1} parent=1 // pred_fallthru
      _
    // Predicated region
    $region14: #{policy_forward.1} parent=1 // pred_check
      _
    $region15: #{policy_forward.1} parent=1 // pred_check_branch
      %21 = sbr.rel (0) target = $region17
    $region16: #{policy_forward.1} parent=1 // pred_region
      %s23 = ssub.s32 4096, 4096
      %24 = vsyncadd [#allocation3], %s23
      %s25 = sshll.u32 [#allocation2], 4
      %s26 = int_to_ptr.vmem [resolvable:$true] %s25
      %31 = dma.hbm_to_vmem [thread:$0]  %s3, 4096, %s26, [#allocation3], 128, 128, 8
    $region17: #{policy_forward.1} parent=1 // pred_fallthru
      _
    // Predicated region
    $region18: #{policy_forward.1} parent=1 // pred_check
      _
    $region19: #{policy_forward.1} parent=1 // pred_check_branch
      %33 = sbr.rel (0) target = $region21
    $region20: #{policy_forward.1} parent=1 // pred_region
      _
    $region21: #{policy_forward.1} parent=1 // pred_fallthru
      _
    // Predicated region
    $region22: #{policy_forward.1} parent=1 // pred_check
      _
    $region23: #{policy_forward.1} parent=1 // pred_check_branch
      %35 = sbr.rel (0) target = $region25
    $region24: #{policy_forward.1} parent=1 // pred_region
      %s37 = ssub.s32 4096, 4096
      %38 = vsyncadd [#allocation5], %s37
      %s39 = sshll.u32 [#allocation4], 4
      %s40 = int_to_ptr.vmem [resolvable:$true] %s39
      %45 = dma.hbm_to_vmem [thread:$0]  %s5, 4096, %s40, [#allocation5], 128, 128, 8
    $region25: #{policy_forward.1} parent=1 // pred_fallthru
      _
    // Predicated region
    $region26: #{policy_forward.1} parent=1 // pred_check
      _
    $region27: #{policy_forward.1} parent=1 // pred_check_branch
      %47 = sbr.rel (0) target = $region29
    $region28: #{policy_forward.1} parent=1 // pred_region
      _
    $region29: #{policy_forward.1} parent=1 // pred_fallthru
      _
    // Predicated region
    $region30: #{policy_forward.1} parent=1 // pred_check
      _
    $region31: #{policy_forward.1} parent=1 // pred_check_branch
      %49 = sbr.rel (0) target = $region33
    $region32: #{policy_forward.1} parent=1 // pred_region
      %50 = dma.done [#allocation3], 4096
    $region33: #{policy_forward.1} parent=1 // pred_fallthru
      _
    // Predicated region
    $region34: #{policy_forward.1} parent=1 // pred_check
      _
    $region35: #{policy_forward.1} parent=1 // pred_check_branch
      %52 = sbr.rel (0) target = $region37
    $region36: #{policy_forward.1} parent=1 // pred_region
      %53 = dma.done [#allocation5], 4096
    $region37: #{policy_forward.1} parent=1 // pred_fallthru
      _
    %v55 = vld [vmem:[%s0] sm:$0xff]
    %v56 = vpack.c.bf16 %v55, %v55
    %v57 = vld [vmem:[%s1] sm:$0xff]
    %v58 = vld [vmem:[%s2] sm:$0x3]
    %v60 = vlaneseq
    %v61 = vshrl.u32 %v60, 7
    %v62 = vsub.s32 0, %v61
    %v63 = vrot.slane %v58, %v62
    %v64 = vlaneseq
    %v65 = vshrl.u32 %v64, 7
    %v66 = vsub.s32 1, %v65
    %v67 = vrot.slane %v58, %v66
    %v71 = vunpack.c.l.b16 %v57
    %v72 = vunpack.c.h.b16 %v57
    %v73 = vpack.c.b16 %v71, %v71
    %v74 = vpack.c.b16 %v72, %v72
    %vm75 = vcmask 64512
    %v77 = vsel %vm75, %v56, 0
    %vm79 = vcmask 1043456
    %v81 = vsel %vm79, %v73, 0
    %v84 = vsel %vm79, %v74, 0
    %86 = vmatprep.subr.bf16.mxu0 0
    %87 = vmatpush1.bf16.msra.mxu0 0
    %88 = vmatprep.subr.bf16.mxu0 0
    %89 = vmatpush1.bf16.msra.mxu0 0
    %90 = vmatprep.subr.bf16.mxu0 0
    %91 = vmatpush1.bf16.msra.mxu0 0
    %92 = vmatprep.subr.bf16.mxu0 0
    %93 = vmatpush1.bf16.msra.mxu0 0
    %94 = vmatprep.subr.bf16.mxu0 0
    %95 = vmatpush1.bf16.msra.mxu0 0
    %96 = vmatprep.subr.bf16.mxu0 0
    %97 = vmatpush1.bf16.msra.mxu0 0
    %98 = vmatprep.subr.bf16.mxu0 0
    %99 = vmatpush1.bf16.msra.mxu0 0
    %100 = vmatprep.subr.bf16.mxu0 %v84
    %101 = vmatpush1.bf16.msra.mxu0 %v81
    %102 = vmatprep.subr.bf16.mxu0 0
    %103 = vmatpush2.bf16.msra.mxu0 0
    %104 = vmatprep.subr.bf16.mxu0 0
    %105 = vmatpush2.bf16.msra.mxu0 0
    %106 = vmatprep.subr.bf16.mxu0 0
    %107 = vmatpush2.bf16.msra.mxu0 0
    %108 = vmatprep.subr.bf16.mxu0 0
    %109 = vmatpush2.bf16.msra.mxu0 0
    %110 = vmatprep.subr.bf16.mxu0 0
    %111 = vmatpush2.bf16.msra.mxu0 0
    %112 = vmatprep.subr.bf16.mxu0 0
    %113 = vmatpush2.bf16.msra.mxu0 0
    %114 = vmatprep.subr.bf16.mxu0 0
    %115 = vmatpush2.bf16.msra.mxu0 0
    %116 = vmatprep.subr.bf16.mxu0 0
    %117 = vmatpush2.bf16.msra.mxu0 0
    %118 = vmatprep.mubr.bf16.mxu0 0
    %119 = vmatmul.mubr.bf16.gmra.mxu0 %v77
    %v120 = vpop.f32.mrf.mxu0
    %v121 = vadd.f32 %v63, %v120
    %v122 = vpop.f32.mrf.mxu0
    %v123 = vadd.f32 %v67, %v122
    %v124 = vpop.f32.mrf.mxu0
    %v125 = vpop.f32.mrf.mxu0
    %126 = vdwg.mxu0
    %v127 = vmax.f32 %v121, 0.0
    %v128 = vmax.f32 %v123, 0.0
    %v129 = vpack.c.bf16 %v127, %v127
    %v130 = vpack.c.bf16 %v128, %v128
    %v131 = vld [vmem:[#allocation2] sm:$0xff]
    %v132 = vld [vmem:[#allocation2 + $0x8] sm:$0xff]
    %v133 = vld [vmem:[#allocation2 + $0x10] sm:$0xff]
    %v134 = vld [vmem:[#allocation2 + $0x18] sm:$0xff]
    %v135 = vld [vmem:[#allocation2 + $0x20] sm:$0xff]
    %v136 = vld [vmem:[#allocation2 + $0x28] sm:$0xff]
    %v137 = vld [vmem:[#allocation2 + $0x30] sm:$0xff]
    %v138 = vld [vmem:[#allocation2 + $0x38] sm:$0xff]
    %v139 = vld [vmem:[#allocation2 + $0x40] sm:$0xff]
    %v140 = vld [vmem:[#allocation2 + $0x48] sm:$0xff]
    %v141 = vld [vmem:[#allocation2 + $0x50] sm:$0xff]
    %v142 = vld [vmem:[#allocation2 + $0x58] sm:$0xff]
    %v143 = vld [vmem:[#allocation2 + $0x60] sm:$0xff]
    %v144 = vld [vmem:[#allocation2 + $0x68] sm:$0xff]
    %v145 = vld [vmem:[#allocation2 + $0x70] sm:$0xff]
    %v146 = vld [vmem:[#allocation2 + $0x78] sm:$0xff]
    %v147 = vld [vmem:[#allocation2 + $0x80] sm:$0xff]
    %v148 = vld [vmem:[#allocation2 + $0x88] sm:$0xff]
    %v149 = vld [vmem:[#allocation2 + $0x90] sm:$0xff]
    %v150 = vld [vmem:[#allocation2 + $0x98] sm:$0xff]
    %v151 = vld [vmem:[#allocation2 + $0xa0] sm:$0xff]
    %v152 = vld [vmem:[#allocation2 + $0xa8] sm:$0xff]
    %v153 = vld [vmem:[#allocation2 + $0xb0] sm:$0xff]
    %v154 = vld [vmem:[#allocation2 + $0xb8] sm:$0xff]
    %v155 = vld [vmem:[#allocation2 + $0xc0] sm:$0xff]
    %v156 = vld [vmem:[#allocation2 + $0xc8] sm:$0xff]
    %v157 = vld [vmem:[#allocation2 + $0xd0] sm:$0xff]
    %v158 = vld [vmem:[#allocation2 + $0xd8] sm:$0xff]
    %v159 = vld [vmem:[#allocation2 + $0xe0] sm:$0xff]
    %v160 = vld [vmem:[#allocation2 + $0xe8] sm:$0xff]
    %v161 = vld [vmem:[#allocation2 + $0xf0] sm:$0xff]
    %v162 = vld [vmem:[#allocation2 + $0xf8] sm:$0xff]
    %v163 = vld [vmem:[%s4] sm:$0x3]
    %v165 = vlaneseq
    %v166 = vshrl.u32 %v165, 7
    %v167 = vsub.s32 0, %v166
    %v168 = vrot.slane %v163, %v167
    %v169 = vlaneseq
    %v170 = vshrl.u32 %v169, 7
    %v171 = vsub.s32 1, %v170
    %v172 = vrot.slane %v163, %v171
    %v207 = vunpack.c.l.b16 %v131
    %v208 = vunpack.c.h.b16 %v131
    %v209 = vunpack.c.l.b16 %v132
    %v210 = vunpack.c.h.b16 %v132
    %v211 = vunpack.c.l.b16 %v133
    %v212 = vunpack.c.h.b16 %v133
    %v213 = vunpack.c.l.b16 %v134
    %v214 = vunpack.c.h.b16 %v134
    %v215 = vunpack.c.l.b16 %v135
    %v216 = vunpack.c.h.b16 %v135
    %v217 = vunpack.c.l.b16 %v136
    %v218 = vunpack.c.h.b16 %v136
    %v219 = vunpack.c.l.b16 %v137
    %v220 = vunpack.c.h.b16 %v137
    %v221 = vunpack.c.l.b16 %v138
    %v222 = vunpack.c.h.b16 %v138
    %v223 = vunpack.c.l.b16 %v139
    %v224 = vunpack.c.h.b16 %v139
    %v225 = vunpack.c.l.b16 %v140
    %v226 = vunpack.c.h.b16 %v140
    %v227 = vunpack.c.l.b16 %v141
    %v228 = vunpack.c.h.b16 %v141
    %v229 = vunpack.c.l.b16 %v142
    %v230 = vunpack.c.h.b16 %v142
    %v231 = vunpack.c.l.b16 %v143
    %v232 = vunpack.c.h.b16 %v143
    %v233 = vunpack.c.l.b16 %v144
    %v234 = vunpack.c.h.b16 %v144
    %v235 = vunpack.c.l.b16 %v145
    %v236 = vunpack.c.h.b16 %v145
    %v237 = vunpack.c.l.b16 %v146
    %v238 = vunpack.c.h.b16 %v146
    %v239 = vunpack.c.l.b16 %v147
    %v240 = vunpack.c.h.b16 %v147
    %v241 = vunpack.c.l.b16 %v148
    %v242 = vunpack.c.h.b16 %v148
    %v243 = vunpack.c.l.b16 %v149
    %v244 = vunpack.c.h.b16 %v149
    %v245 = vunpack.c.l.b16 %v150
    %v246 = vunpack.c.h.b16 %v150
    %v247 = vunpack.c.l.b16 %v151
    %v248 = vunpack.c.h.b16 %v151
    %v249 = vunpack.c.l.b16 %v152
    %v250 = vunpack.c.h.b16 %v152
    %v251 = vunpack.c.l.b16 %v153
    %v252 = vunpack.c.h.b16 %v153
    %v253 = vunpack.c.l.b16 %v154
    %v254 = vunpack.c.h.b16 %v154
    %v255 = vunpack.c.l.b16 %v155
    %v256 = vunpack.c.h.b16 %v155
    %v257 = vunpack.c.l.b16 %v156
    %v258 = vunpack.c.h.b16 %v156
    %v259 = vunpack.c.l.b16 %v157
    %v260 = vunpack.c.h.b16 %v157
    %v261 = vunpack.c.l.b16 %v158
    %v262 = vunpack.c.h.b16 %v158
    %v263 = vunpack.c.l.b16 %v159
    %v264 = vunpack.c.h.b16 %v159
    %v265 = vunpack.c.l.b16 %v160
    %v266 = vunpack.c.h.b16 %v160
    %v267 = vunpack.c.l.b16 %v161
    %v268 = vunpack.c.h.b16 %v161
    %v269 = vunpack.c.l.b16 %v162
    %v270 = vunpack.c.h.b16 %v162
    %v271 = vpack.c.b16 %v209, %v207
    %v272 = vpack.c.b16 %v210, %v208
    %v273 = vpack.c.b16 %v213, %v211
    %v274 = vpack.c.b16 %v214, %v212
    %v275 = vpack.c.b16 %v217, %v215
    %v276 = vpack.c.b16 %v218, %v216
    %v277 = vpack.c.b16 %v221, %v219
    %v278 = vpack.c.b16 %v222, %v220
    %v279 = vpack.c.b16 %v225, %v223
    %v280 = vpack.c.b16 %v226, %v224
    %v281 = vpack.c.b16 %v229, %v227
    %v282 = vpack.c.b16 %v230, %v228
    %v283 = vpack.c.b16 %v233, %v231
    %v284 = vpack.c.b16 %v234, %v232
    %v285 = vpack.c.b16 %v237, %v235
    %v286 = vpack.c.b16 %v238, %v236
    %v287 = vpack.c.b16 %v241, %v239
    %v288 = vpack.c.b16 %v242, %v240
    %v289 = vpack.c.b16 %v245, %v243
    %v290 = vpack.c.b16 %v246, %v244
    %v291 = vpack.c.b16 %v249, %v247
    %v292 = vpack.c.b16 %v250, %v248
    %v293 = vpack.c.b16 %v253, %v251
    %v294 = vpack.c.b16 %v254, %v252
    %v295 = vpack.c.b16 %v257, %v255
    %v296 = vpack.c.b16 %v258, %v256
    %v297 = vpack.c.b16 %v261, %v259
    %v298 = vpack.c.b16 %v262, %v260
    %v299 = vpack.c.b16 %v265, %v263
    %v300 = vpack.c.b16 %v266, %v264
    %v301 = vpack.c.b16 %v269, %v267
    %v302 = vpack.c.b16 %v270, %v268
    %335 = vmatprep.subr.bf16.mxu0 %v286
    %336 = vmatpush1.bf16.msra.mxu0 %v285
    %337 = vmatprep.subr.bf16.mxu0 %v284
    %338 = vmatpush1.bf16.msra.mxu0 %v283
    %339 = vmatprep.subr.bf16.mxu0 %v282
    %340 = vmatpush1.bf16.msra.mxu0 %v281
    %341 = vmatprep.subr.bf16.mxu0 %v280
    %342 = vmatpush1.bf16.msra.mxu0 %v279
    %343 = vmatprep.subr.bf16.mxu0 %v278
    %344 = vmatpush1.bf16.msra.mxu0 %v277
    %345 = vmatprep.subr.bf16.mxu0 %v276
    %346 = vmatpush1.bf16.msra.mxu0 %v275
    %347 = vmatprep.subr.bf16.mxu0 %v274
    %348 = vmatpush1.bf16.msra.mxu0 %v273
    %349 = vmatprep.subr.bf16.mxu0 %v272
    %350 = vmatpush1.bf16.msra.mxu0 %v271
    %351 = vmatprep.subr.bf16.mxu0 %v302
    %352 = vmatpush2.bf16.msra.mxu0 %v301
    %353 = vmatprep.subr.bf16.mxu0 %v300
    %354 = vmatpush2.bf16.msra.mxu0 %v299
    %355 = vmatprep.subr.bf16.mxu0 %v298
    %356 = vmatpush2.bf16.msra.mxu0 %v297
    %357 = vmatprep.subr.bf16.mxu0 %v296
    %358 = vmatpush2.bf16.msra.mxu0 %v295
    %359 = vmatprep.subr.bf16.mxu0 %v294
    %360 = vmatpush2.bf16.msra.mxu0 %v293
    %361 = vmatprep.subr.bf16.mxu0 %v292
    %362 = vmatpush2.bf16.msra.mxu0 %v291
    %363 = vmatprep.subr.bf16.mxu0 %v290
    %364 = vmatpush2.bf16.msra.mxu0 %v289
    %365 = vmatprep.subr.bf16.mxu0 %v288
    %366 = vmatpush2.bf16.msra.mxu0 %v287
    %367 = vmatprep.mubr.bf16.mxu0 %v130
    %368 = vmatmul.mubr.bf16.gmra.mxu0 %v129
    %v369 = vpop.f32.mrf.mxu0
    %v370 = vadd.f32 %v168, %v369
    %v371 = vpop.f32.mrf.mxu0
    %v372 = vadd.f32 %v172, %v371
    %v373 = vpop.f32.mrf.mxu0
    %v374 = vpop.f32.mrf.mxu0
    %375 = vdwg.mxu0
    %v376 = vmax.f32 %v370, 0.0
    %v377 = vmax.f32 %v372, 0.0
    %v378 = vpack.c.bf16 %v376, %v376
    %v379 = vpack.c.bf16 %v377, %v377
    %v380 = vld [vmem:[#allocation4] sm:$0xff]
    %v381 = vld [vmem:[#allocation4 + $0x8] sm:$0xff]
    %v382 = vld [vmem:[#allocation4 + $0x10] sm:$0xff]
    %v383 = vld [vmem:[#allocation4 + $0x18] sm:$0xff]
    %v384 = vld [vmem:[#allocation4 + $0x20] sm:$0xff]
    %v385 = vld [vmem:[#allocation4 + $0x28] sm:$0xff]
    %v386 = vld [vmem:[#allocation4 + $0x30] sm:$0xff]
    %v387 = vld [vmem:[#allocation4 + $0x38] sm:$0xff]
    %v388 = vld [vmem:[#allocation4 + $0x40] sm:$0xff]
    %v389 = vld [vmem:[#allocation4 + $0x48] sm:$0xff]
    %v390 = vld [vmem:[#allocation4 + $0x50] sm:$0xff]
    %v391 = vld [vmem:[#allocation4 + $0x58] sm:$0xff]
    %v392 = vld [vmem:[#allocation4 + $0x60] sm:$0xff]
    %v393 = vld [vmem:[#allocation4 + $0x68] sm:$0xff]
    %v394 = vld [vmem:[#allocation4 + $0x70] sm:$0xff]
    %v395 = vld [vmem:[#allocation4 + $0x78] sm:$0xff]
    %v396 = vld [vmem:[#allocation4 + $0x80] sm:$0xff]
    %v397 = vld [vmem:[#allocation4 + $0x88] sm:$0xff]
    %v398 = vld [vmem:[#allocation4 + $0x90] sm:$0xff]
    %v399 = vld [vmem:[#allocation4 + $0x98] sm:$0xff]
    %v400 = vld [vmem:[#allocation4 + $0xa0] sm:$0xff]
    %v401 = vld [vmem:[#allocation4 + $0xa8] sm:$0xff]
    %v402 = vld [vmem:[#allocation4 + $0xb0] sm:$0xff]
    %v403 = vld [vmem:[#allocation4 + $0xb8] sm:$0xff]
    %v404 = vld [vmem:[#allocation4 + $0xc0] sm:$0xff]
    %v405 = vld [vmem:[#allocation4 + $0xc8] sm:$0xff]
    %v406 = vld [vmem:[#allocation4 + $0xd0] sm:$0xff]
    %v407 = vld [vmem:[#allocation4 + $0xd8] sm:$0xff]
    %v408 = vld [vmem:[#allocation4 + $0xe0] sm:$0xff]
    %v409 = vld [vmem:[#allocation4 + $0xe8] sm:$0xff]
    %v410 = vld [vmem:[#allocation4 + $0xf0] sm:$0xff]
    %v411 = vld [vmem:[#allocation4 + $0xf8] sm:$0xff]
    %v412 = vld [vmem:[%s6] sm:$0x3]
    %v414 = vlaneseq
    %v415 = vshrl.u32 %v414, 7
    %v416 = vsub.s32 0, %v415
    %v417 = vrot.slane %v412, %v416
    %v418 = vlaneseq
    %v419 = vshrl.u32 %v418, 7
    %v420 = vsub.s32 1, %v419
    %v421 = vrot.slane %v412, %v420
    %v456 = vunpack.c.l.b16 %v380
    %v457 = vunpack.c.h.b16 %v380
    %v458 = vunpack.c.l.b16 %v381
    %v459 = vunpack.c.h.b16 %v381
    %v460 = vunpack.c.l.b16 %v382
    %v461 = vunpack.c.h.b16 %v382
    %v462 = vunpack.c.l.b16 %v383
    %v463 = vunpack.c.h.b16 %v383
    %v464 = vunpack.c.l.b16 %v384
    %v465 = vunpack.c.h.b16 %v384
    %v466 = vunpack.c.l.b16 %v385
    %v467 = vunpack.c.h.b16 %v385
    %v468 = vunpack.c.l.b16 %v386
    %v469 = vunpack.c.h.b16 %v386
    %v470 = vunpack.c.l.b16 %v387
    %v471 = vunpack.c.h.b16 %v387
    %v472 = vunpack.c.l.b16 %v388
    %v473 = vunpack.c.h.b16 %v388
    %v474 = vunpack.c.l.b16 %v389
    %v475 = vunpack.c.h.b16 %v389
    %v476 = vunpack.c.l.b16 %v390
    %v477 = vunpack.c.h.b16 %v390
    %v478 = vunpack.c.l.b16 %v391
    %v479 = vunpack.c.h.b16 %v391
    %v480 = vunpack.c.l.b16 %v392
    %v481 = vunpack.c.h.b16 %v392
    %v482 = vunpack.c.l.b16 %v393
    %v483 = vunpack.c.h.b16 %v393
    %v484 = vunpack.c.l.b16 %v394
    %v485 = vunpack.c.h.b16 %v394
    %v486 = vunpack.c.l.b16 %v395
    %v487 = vunpack.c.h.b16 %v395
    %v488 = vunpack.c.l.b16 %v396
    %v489 = vunpack.c.h.b16 %v396
    %v490 = vunpack.c.l.b16 %v397
    %v491 = vunpack.c.h.b16 %v397
    %v492 = vunpack.c.l.b16 %v398
    %v493 = vunpack.c.h.b16 %v398
    %v494 = vunpack.c.l.b16 %v399
    %v495 = vunpack.c.h.b16 %v399
    %v496 = vunpack.c.l.b16 %v400
    %v497 = vunpack.c.h.b16 %v400
    %v498 = vunpack.c.l.b16 %v401
    %v499 = vunpack.c.h.b16 %v401
    %v500 = vunpack.c.l.b16 %v402
    %v501 = vunpack.c.h.b16 %v402
    %v502 = vunpack.c.l.b16 %v403
    %v503 = vunpack.c.h.b16 %v403
    %v504 = vunpack.c.l.b16 %v404
    %v505 = vunpack.c.h.b16 %v404
    %v506 = vunpack.c.l.b16 %v405
    %v507 = vunpack.c.h.b16 %v405
    %v508 = vunpack.c.l.b16 %v406
    %v509 = vunpack.c.h.b16 %v406
    %v510 = vunpack.c.l.b16 %v407
    %v511 = vunpack.c.h.b16 %v407
    %v512 = vunpack.c.l.b16 %v408
    %v513 = vunpack.c.h.b16 %v408
    %v514 = vunpack.c.l.b16 %v409
    %v515 = vunpack.c.h.b16 %v409
    %v516 = vunpack.c.l.b16 %v410
    %v517 = vunpack.c.h.b16 %v410
    %v518 = vunpack.c.l.b16 %v411
    %v519 = vunpack.c.h.b16 %v411
    %v520 = vpack.c.b16 %v458, %v456
    %v521 = vpack.c.b16 %v459, %v457
    %v522 = vpack.c.b16 %v462, %v460
    %v523 = vpack.c.b16 %v463, %v461
    %v524 = vpack.c.b16 %v466, %v464
    %v525 = vpack.c.b16 %v467, %v465
    %v526 = vpack.c.b16 %v470, %v468
    %v527 = vpack.c.b16 %v471, %v469
    %v528 = vpack.c.b16 %v474, %v472
    %v529 = vpack.c.b16 %v475, %v473
    %v530 = vpack.c.b16 %v478, %v476
    %v531 = vpack.c.b16 %v479, %v477
    %v532 = vpack.c.b16 %v482, %v480
    %v533 = vpack.c.b16 %v483, %v481
    %v534 = vpack.c.b16 %v486, %v484
    %v535 = vpack.c.b16 %v487, %v485
    %v536 = vpack.c.b16 %v490, %v488
    %v537 = vpack.c.b16 %v491, %v489
    %v538 = vpack.c.b16 %v494, %v492
    %v539 = vpack.c.b16 %v495, %v493
    %v540 = vpack.c.b16 %v498, %v496
    %v541 = vpack.c.b16 %v499, %v497
    %v542 = vpack.c.b16 %v502, %v500
    %v543 = vpack.c.b16 %v503, %v501
    %v544 = vpack.c.b16 %v506, %v504
    %v545 = vpack.c.b16 %v507, %v505
    %v546 = vpack.c.b16 %v510, %v508
    %v547 = vpack.c.b16 %v511, %v509
    %v548 = vpack.c.b16 %v514, %v512
    %v549 = vpack.c.b16 %v515, %v513
    %v550 = vpack.c.b16 %v518, %v516
    %v551 = vpack.c.b16 %v519, %v517
    %584 = vmatprep.subr.bf16.mxu0 %v535
    %585 = vmatpush1.bf16.msra.mxu0 %v534
    %586 = vmatprep.subr.bf16.mxu0 %v533
    %587 = vmatpush1.bf16.msra.mxu0 %v532
    %588 = vmatprep.subr.bf16.mxu0 %v531
    %589 = vmatpush1.bf16.msra.mxu0 %v530
    %590 = vmatprep.subr.bf16.mxu0 %v529
    %591 = vmatpush1.bf16.msra.mxu0 %v528
    %592 = vmatprep.subr.bf16.mxu0 %v527
    %593 = vmatpush1.bf16.msra.mxu0 %v526
    %594 = vmatprep.subr.bf16.mxu0 %v525
    %595 = vmatpush1.bf16.msra.mxu0 %v524
    %596 = vmatprep.subr.bf16.mxu0 %v523
    %597 = vmatpush1.bf16.msra.mxu0 %v522
    %598 = vmatprep.subr.bf16.mxu0 %v521
    %599 = vmatpush1.bf16.msra.mxu0 %v520
    %600 = vmatprep.subr.bf16.mxu0 %v551
    %601 = vmatpush2.bf16.msra.mxu0 %v550
    %602 = vmatprep.subr.bf16.mxu0 %v549
    %603 = vmatpush2.bf16.msra.mxu0 %v548
    %604 = vmatprep.subr.bf16.mxu0 %v547
    %605 = vmatpush2.bf16.msra.mxu0 %v546
    %606 = vmatprep.subr.bf16.mxu0 %v545
    %607 = vmatpush2.bf16.msra.mxu0 %v544
    %608 = vmatprep.subr.bf16.mxu0 %v543
    %609 = vmatpush2.bf16.msra.mxu0 %v542
    %610 = vmatprep.subr.bf16.mxu0 %v541
    %611 = vmatpush2.bf16.msra.mxu0 %v540
    %612 = vmatprep.subr.bf16.mxu0 %v539
    %613 = vmatpush2.bf16.msra.mxu0 %v538
    %614 = vmatprep.subr.bf16.mxu0 %v537
    %615 = vmatpush2.bf16.msra.mxu0 %v536
    %616 = vmatprep.mubr.bf16.mxu0 %v379
    %617 = vmatmul.mubr.bf16.gmra.mxu0 %v378
    %v618 = vpop.f32.mrf.mxu0
    %v619 = vadd.f32 %v417, %v618
    %v620 = vpop.f32.mrf.mxu0
    %v621 = vadd.f32 %v421, %v620
    %v622 = vpop.f32.mrf.mxu0
    %v623 = vpop.f32.mrf.mxu0
    %624 = vdwg.mxu0
    %v625 = vlaneseq
    %v626 = vand.u32 %v625, 127
    %v627 = vadd.s32 %v626, 128
    %v628 = vmax.f32 %v619, -20.0
    %v629 = vmax.f32 %v621, -20.0
    %v630 = vmin.f32 %v628, 2.0
    %v631 = vmin.f32 %v629, 2.0
    %vm632 = vcmp.ge.s32.totalorder %v626, 128
    %vm633 = vcmp.ge.s32.totalorder %v627, 128
    %v634 = vsel %vm632, %v630, %v619
    %v635 = vsel %vm633, %v631, %v621
    %v636 = vpack.c.bf16 %v634, %v634
    %v637 = vpack.c.bf16 %v635, %v635
    %v640 = vunpack.c.l.b16 %v636
    %v641 = vunpack.c.l.b16 %v637
    %v642 = vpack.c.b16 %v641, %v640
    %644 = vst [vmem:[%s7] sm:$0xff] %v642
    // Predicated region
    $region38: #{policy_forward.1} parent=1 // pred_check
      _
    $region39: #{policy_forward.1} parent=1 // pred_check_branch
      %646 = sbr.rel (0) target = $region41
    $region40: #{policy_forward.1} parent=1 // pred_region
      _
    $region41: #{policy_forward.1} parent=1 // pred_fallthru
      _
    // Predicated region
    $region42: #{policy_forward.1} parent=1 // pred_check
      _
    $region43: #{policy_forward.1} parent=1 // pred_check_branch
      %648 = sbr.rel (0) target = $region45
    $region44: #{policy_forward.1} parent=1 // pred_region
      _
    $region45: #{policy_forward.1} parent=1 // pred_fallthru
      _
    %649 = vsyncpa [#allocation3], 1
    %650 = vsyncpa [#allocation5], 1

</llo_original>
